<compile_context>
chip_gen: v6e
topology: v6e:2x2x1
jax: 0.10.0
libtpu: 0.0.40
codegen_flags: <defaults>
</compile_context>

<pallas_src>
import numpy as np
import jax
import jax.numpy as jnp
from jax import lax
from jax.experimental import pallas as pl
from jax.experimental.pallas import tpu as pltpu

# ------------------------------------------------------------------------------
# Filter-bank ("kernel" class) — hard-coded in scattering.__init__:
#   kernel(K=1, R=3, d=[0.5, 0.5], J=8, lamb_max=2)
# Tiny per-eigenvalue scalar responses (J*V values); kept as JAX glue.
# ------------------------------------------------------------------------------
KERNEL_R = 3.0
KERNEL_D = (0.5, 0.5)
KERNEL_J = 8
KERNEL_LAMB_MAX = 2.0
KERNEL_A = KERNEL_R * np.log10(KERNEL_LAMB_MAX) / (KERNEL_J - KERNEL_R + 1)


def _g_hat(lamb):
    # sum_k d[k] * cos(2*pi*k*(lamb/a + 0.5)) * 1{ -lamb >= 0 and -lamb < a }
    ind = jnp.logical_and(-lamb >= 0.0, -lamb < KERNEL_A).astype(jnp.float32)
    out = jnp.zeros_like(lamb)
    for k, dk in enumerate(KERNEL_D):
        out = out + dk * jnp.cos(2.0 * np.pi * k * (lamb / KERNEL_A + 0.5))
    return out * ind


def _wavelet(lamb, j):
    # wavelet response for filter index j in [2, J]
    lamb_star = 10.0 ** (KERNEL_A * ((j - 1) / KERNEL_R - 1.0))
    lamb_c = jnp.maximum(lamb, lamb_star)
    return _g_hat(jnp.log10(lamb_c) - KERNEL_A * (j - 1) / KERNEL_R)


def _scaling(lamb):
    # scaling function (j = 1); the sum uses the kernel's own J (= 8)
    base = KERNEL_R * KERNEL_D[0] ** 2 + KERNEL_R / 2.0 * sum(d ** 2 for d in KERNEL_D)
    acc = jnp.full_like(lamb, base)
    for i in range(2, KERNEL_J + 1):
        acc = acc - jnp.abs(_wavelet(lamb, i)) ** 2
    return jnp.sqrt(acc)


def _round_up(x, m):
    return ((x + m - 1) // m) * m


# ------------------------------------------------------------------------------
# Pallas kernel 1: build the stacked filter slab G.
# Rows [j*Vp, (j+1)*Vp) of G hold  Veig @ diag(filt[j]) @ Veig.T  (lane-dense).
# ------------------------------------------------------------------------------
def _filter_matrix_kernel(filt_ref, veig_ref, g_ref):
    # filt_ref: (1, 1, Vp)  diagonal filter response of filter j
    # veig_ref: (Vp, Vp)    zero-padded eigenvectors (columns); VMEM-resident
    # g_ref:    (Vp, Vp)    output rows [j*Vp, (j+1)*Vp) of the (J*Vp, Vp) slab
    v = veig_ref[...]
    s = filt_ref[0]                                   # (1, Vp): scales columns -> V @ diag(s)
    # (V @ diag(s)) @ V.T without materializing a transpose: contract last dims.
    g_ref[...] = lax.dot_general(
        v * s, v,
        dimension_numbers=(((1,), (1,)), ((), ())),
        preferred_element_type=jnp.float32,
    ).astype(g_ref.dtype)


def build_filter_matrices(filt_p, veig_p):
    # filt_p: (J, Vp) padded filter responses;  veig_p: (Vp, Vp) padded eigvecs
    # returns G: (J*Vp, Vp) stacked filter slab
    J, Vp = filt_p.shape
    return pl.pallas_call(
        _filter_matrix_kernel,
        out_shape=jax.ShapeDtypeStruct((J * Vp, Vp), jnp.float32),
        grid_spec=pltpu.PrefetchScalarGridSpec(
            num_scalar_prefetch=0,
            grid=(J,),
            in_specs=[
                pl.BlockSpec((1, 1, Vp), lambda j: (j, 0, 0)),
                pl.BlockSpec((Vp, Vp), lambda j: (0, 0)),   # constant index -> no re-DMA
            ],
            out_specs=pl.BlockSpec((Vp, Vp), lambda j: (j, 0)),
        ),
        compiler_params=pltpu.CompilerParams(dimension_semantics=("parallel",)),
    )(filt_p.reshape(J, 1, Vp), veig_p)


# ------------------------------------------------------------------------------
# Pallas kernel 2: one fused scattering layer.
# out[j*Vp:(j+1)*Vp, :] = | g_j @ U |  for every filter j, all parents at once.
# ------------------------------------------------------------------------------
def _scatter_layer_kernel(g_ref, u_ref, out_ref):
    # g_ref:   (Vp, Vp)  filter block j of the stacked slab
    # u_ref:   (Vp, Np)  all P parent signals packed along lanes (Np % 128 == 0)
    # out_ref: (Vp, Np)  |g_j @ U| — lane-dense, unmasked stores
    out_ref[...] = jnp.abs(
        jnp.dot(g_ref[...], u_ref[...], preferred_element_type=jnp.float32)
    ).astype(out_ref.dtype)


def scattering_layer(G, u_flat_padded, J):
    JVp, Vp = G.shape
    assert JVp == J * Vp
    _, Np = u_flat_padded.shape
    return pl.pallas_call(
        _scatter_layer_kernel,
        out_shape=jax.ShapeDtypeStruct((J * Vp, Np), jnp.float32),
        grid_spec=pltpu.PrefetchScalarGridSpec(
            num_scalar_prefetch=0,
            grid=(J,),                                     # filter axis: >=2, parallel (v7x 2 TCs)
            in_specs=[
                pl.BlockSpec((Vp, Vp), lambda j: (j, 0)),  # one g_j block per step
                pl.BlockSpec((Vp, Np), lambda j: (0, 0)),  # U stays VMEM-resident
            ],
            out_specs=pl.BlockSpec((Vp, Np), lambda j: (j, 0)),
        ),
        compiler_params=pltpu.CompilerParams(dimension_semantics=("parallel",)),
    )(G, u_flat_padded)


# ------------------------------------------------------------------------------
# Forward pass of `scattering` (same semantics as the PyTorch module)
# ------------------------------------------------------------------------------
def compute_spectrum(W):
    deg = W.sum(axis=1)
    Lap = jnp.diag(deg) - W
    dhalf = jnp.diag(1.0 / jnp.sqrt(jnp.maximum(jnp.ones_like(deg), deg)))
    Ln = dhalf @ Lap @ dhalf
    # TODO(synk): symmetric eigendecomposition (torch.symeig) has no Pallas
    # equivalent; computed with jnp.linalg.eigh outside the kernel.
    E, Vec = jnp.linalg.eigh(Ln)
    return jnp.abs(E), Vec


def scattering_forward(W, f, J, L):
    V, C = f.shape
    E, Vec = compute_spectrum(W)
    responses = [_scaling(E)] + [_wavelet(E, j) for j in range(2, J + 1)]
    filt = jnp.stack(responses).astype(jnp.float32)            # (J, V)

    # Pad vertex dim to a 128-multiple: all Pallas blocks become (8,128)-aligned
    # and the MXU M/K dims are fully occupied.  Zero padding is exact.
    Vp = _round_up(V, 128)
    Vec_p = jnp.zeros((Vp, Vp), jnp.float32).at[:V, :V].set(Vec.astype(jnp.float32))
    filt_p = jnp.zeros((J, Vp), jnp.float32).at[:, :V].set(filt)

    # NOTE: f32 MXU operands keep the 1e-4 test tolerance; on v6e/v7x casting
    # G / u_flat to bfloat16 (f32 accumulation) gives ~2-3x matmul throughput.
    G = build_filter_matrices(filt_p, Vec_p)                   # (J*Vp, Vp), built once

    S_parts = [jnp.mean(f, axis=0)]                            # S = mean(f, dim=0)
    u_flat = jnp.zeros((Vp, C), jnp.float32).at[:V, :].set(f.astype(jnp.float32))
    P = 1                                                      # number of parent paths
    for _ in range(L):
        N = P * C
        Np = _round_up(N, 128)                                 # lane-dense output width
        u_in = jnp.zeros((Vp, Np), jnp.float32).at[:, :N].set(u_flat)
        out = scattering_layer(G, u_in, J)                     # (J*Vp, Np) = |G @ U|
        h = out.reshape(J, Vp, Np)[:, :, :N].reshape(J, Vp, P, C)
        # S contribution: vertex-mean, ordered parent-major / filter-minor.
        s = jnp.mean(h[:, :V], axis=1)                         # (J, P, C)
        S_parts.append(jnp.transpose(s, (1, 0, 2)).reshape(-1))
        # Next layer parents: p' = p*J + j  ->  column layout (P, J, C).
        # Padded rows (>= V) of h are exactly zero, so they remain valid padding.
        u_flat = jnp.transpose(h, (1, 2, 0, 3)).reshape(Vp, P * J * C)
        P = P * J
    return jnp.concatenate(S_parts, axis=0)


# Pure-JAX reference, mirroring the PyTorch loop structure exactly.
def scattering_ref(W, f, J, L):
    E, Vec = compute_spectrum(W)
    responses = [_scaling(E)] + [_wavelet(E, j) for j in range(2, J + 1)]
    g = jnp.stack([Vec @ jnp.diag(r) @ Vec.T for r in responses])
    U_ = [f]
    S = jnp.mean(f, axis=0)
    for _ in range(L):
        U = list(U_)
        U_ = []
        for f_ in U:
            for g_j in g:
                h = jnp.abs(g_j @ f_)
                U_.append(h)
                S = jnp.concatenate([S, jnp.mean(h, axis=0)])
    return S


if __name__ == "__main__":
    V_n, d_f, J, L = 16, 4, 3, 2    # V=16 nodes, 4 channels, J=3 filters, L=2 layers

    key = jax.random.PRNGKey(0)
    k1, k2 = jax.random.split(key)
    A = jax.random.uniform(k1, (V_n, V_n), dtype=jnp.float32)
    W = (A + A.T) * 0.5
    W = W * (1.0 - jnp.eye(V_n, dtype=jnp.float32))             # symmetric adjacency
    f = jax.random.normal(k2, (V_n, d_f), dtype=jnp.float32)    # graph signal (V, C)

    S = scattering_forward(W, f, J, L)
    S = jax.block_until_ready(S)

    S_ref = scattering_ref(W, f, J, L)
    assert S.shape == (d_f * (1 + J + J * J),)
    np.testing.assert_allclose(np.asarray(S), np.asarray(S_ref), rtol=1e-4, atol=1e-4)
    print("KERNEL_OK")
</pallas_src>

<mosaic_0001>
module attributes {stable_mosaic.version = 11 : i64} {
  func.func @_filter_matrix_kernel(%arg0: i32, %arg1: memref<1x1x128xf32, #tpu.memory_space<vmem>>, %arg2: memref<128x128xf32, #tpu.memory_space<vmem>>, %arg3: memref<128x128xf32, #tpu.memory_space<vmem>>) attributes {dimension_semantics = [#tpu.dimension_semantics<parallel>], iteration_bounds = array<i64: 3>, scalar_prefetch = 0 : i64, scratch_operands = 0 : i64, tpu.core_type = #tpu.core_type<tc>, window_params = [{transform_indices = @transform_0, window_bounds = array<i64: 1, 1, 128>}, {pipeline_mode = #tpu.pipeline_mode<synchronous>, transform_indices = @transform_1, window_bounds = array<i64: 128, 128>}, {transform_indices = @transform_2, window_bounds = array<i64: 128, 128>}]} {
    %c0 = arith.constant 0 : index
    %c0_0 = arith.constant 0 : index
    %0 = vector.load %arg2[%c0, %c0_0] : memref<128x128xf32, #tpu.memory_space<vmem>>, vector<128x128xf32>
    %c0_1 = arith.constant 0 : index
    %c0_2 = arith.constant 0 : index
    %c0_3 = arith.constant 0 : index
    %1 = vector.load %arg1[%c0_1, %c0_2, %c0_3] : memref<1x1x128xf32, #tpu.memory_space<vmem>>, vector<1x1x128xf32>
    %2 = vector.shape_cast %1 : vector<1x1x128xf32> to vector<1x128xf32>
    %3 = vector.broadcast %2 : vector<1x128xf32> to vector<128x128xf32>
    %4 = arith.mulf %0, %3 : vector<128x128xf32>
    %cst = arith.constant dense<0.000000e+00> : vector<128x128xf32>
    %5 = tpu.matmul %4, %0, %cst {dimension_numbers = #tpu.dot_dimension_numbers<[1], [1], [0], [0], [0, 0, 1, 0], [], []>} : vector<128x128xf32>, vector<128x128xf32>, vector<128x128xf32> -> vector<128x128xf32>
    %c0_4 = arith.constant 0 : index
    %c0_5 = arith.constant 0 : index
    %6 = vector.load %arg3[%c0_4, %c0_5] : memref<128x128xf32, #tpu.memory_space<vmem>>, vector<128x128xf32>
    tpu.vector_store %arg3[%c0_4, %c0_5], %5 {strides = array<i32>} : memref<128x128xf32, #tpu.memory_space<vmem>>, vector<128x128xf32>,
    return
  }
  func.func @transform_0(%arg0: i32) -> (i32, i32, i32) {
    %c0_i32 = arith.constant 0 : i32
    %c0_i32_0 = arith.constant 0 : i32
    %c0_i32_1 = arith.constant 0 : i32
    return %arg0, %c0_i32, %c0_i32_0 : i32, i32, i32
  }
  func.func @transform_1(%arg0: i32) -> (i32, i32) {
    %c0_i32 = arith.constant 0 : i32
    %c0_i32_0 = arith.constant 0 : i32
    %c0_i32_1 = arith.constant 0 : i32
    return %c0_i32, %c0_i32_0 : i32, i32
  }
  func.func @transform_2(%arg0: i32) -> (i32, i32) {
    %c0_i32 = arith.constant 0 : i32
    %c0_i32_0 = arith.constant 0 : i32
    return %arg0, %c0_i32 : i32, i32
  }
}

</mosaic_0001>

<llo_original>
// kernel: tpu_custom_call.1
$region0: #{tpu_custom_call.1}
  #allocation0 [shape = 'u32[]', space=smem, size = 0x4, offset = 0x4, fixed_abs, tag = 'smem constant byte address 0x4 - core index']
  #allocation1 [shape = 'u32[144,128]{1,0:T(1,128)}', space=vmem, size = 0x12000, scoped, tag = 'internal scratch']
  %s0 = inlined_call_operand.hbm [shape: f32[3,1,128], index: 0, kind: input, shape index: {}]
  %s1 = inlined_call_operand.hbm [shape: f32[128,128], index: 1, kind: input, shape index: {}]
  %s2 = inlined_call_operand.hbm [shape: f32[384,128], index: 2, kind: output, shape index: {}]
  %s3 = sld [smem:[#allocation0]]
  $region49: #{tpu_custom_call.1} parent=0
    _
  %s5 = ssub.s32 1, %s3
  %s6 = scalar_select 0, %s5, %s3
  $region1: #{tpu_custom_call.1} parent=0
    #allocation2 [shape = 'u8[1024]{0}', space=vmem, size = 0x400, scoped, tag = 'input window, operand 0']
    #allocation3 [shape = 's32[2]{0}', space=sflag, size = 0x8, scoped, tag = 'scoped memory for tpu_custom_call.1']
    #allocation4 [shape = 's32[2]{0}', space=sflag, size = 0x8, scoped, tag = 'scoped memory for tpu_custom_call.1']
    #allocation5 [shape = 'u8[65536]{0}', space=vmem, size = 0x10000, scoped, tag = 'input window, operand 1, single buffered']
    #allocation6 [shape = 's32[1]{0}', space=sflag, size = 0x4, scoped, tag = 'scoped memory for tpu_custom_call.1']
    #allocation7 [shape = 'u8[131072]{0}', space=vmem, size = 0x20000, scoped, tag = 'output window, operand 0']
    %7 = vsyncpa [#allocation3], 0
    %s8 = scalar_lea.sflag [#allocation3], 1
    %9 = vsyncpa %s8, 0
    %10 = vsyncpa [#allocation6], 0
    %11 = vsyncpa [#allocation4], 0
    %s12 = scalar_lea.sflag [#allocation4], 1
    %13 = vsyncpa %s12, 0
    loop: start=0, step=1, limit=5
    $region2: #{tpu_custom_call.1} parent=1 // loop_pre_header
      _
    $region3: #{tpu_custom_call.1} parent=1 // loop_header
      %s15 = sphi 0, %s19
      %p16 = scmp.ge.s32.totalorder %s15, 5
      %s25 = sphi 0, %s27
      %s28 = sphi 0, %s25
      %s29 = sphi 0, %s28
      %s45 = sphi 0, %s29
      %s49 = sphi 0, %s49
      %s51 = sphi 0, %s49
      %s52 = sphi 0, %s51
      %s66 = sphi 0, %s52
      %s72 = sphi 0, %s74
      %s75 = sphi 0, %s72
      %s76 = sphi 0, %s75
      %s92 = sphi 0, %s76
    $region4: #{tpu_custom_call.1} parent=1 // loop_header_branch
      %18 = sbr.rel (%p16) target = $region8
    $region5: #{tpu_custom_call.1} parent=1 // loop_body
      %s20 = ssub.s32 %s15, 1
      %s21 = ssub.s32 %s15, 2
      %s22 = sadd.s32 %s15, 1
      %s23 = ssub.s32 %s15, %s22
      %p24 = scmp.eq.s32.totalorder %s23, 0
      %s26 = sadd.s32 %s25, 1
      %s27 = scalar_select %p24, %s25, %s26
      %p30 = pneg %p24
      %p31 = scmp.eq.s32.totalorder %s15, 2
      %p32 = por %p30, %p31
      %p33 = scmp.ne.s32.totalorder %s25, %s28
      %p34 = scmp.eq.s32.totalorder %s15, 0
      %p35 = por %p33, %p34
      %p36 = scmp.ne.s32.totalorder %s25, %s28
      %p37 = scmp.eq.s32.totalorder %s20, 2
      %p38 = por %p36, %p37
      %p39 = scmp.ne.s32.totalorder %s28, %s29
      %p40 = scmp.eq.s32.totalorder %s20, 0
      %p41 = por %p39, %p40
      %p42 = scmp.ne.s32.totalorder %s28, %s29
      %p43 = scmp.eq.s32.totalorder %s21, 2
      %p44 = por %p42, %p43
      %p46 = scmp.ne.s32.totalorder %s29, %s45
      %p47 = scmp.eq.s32.totalorder %s21, 0
      %p48 = por %p46, %p47
      %s50 = sadd.s32 %s49, 1
      %p53 = scmp.eq.s32.totalorder %s15, 2
      %p54 = scmp.ne.s32.totalorder %s49, %s51
      %p55 = scmp.eq.s32.totalorder %s15, 0
      %p56 = por %p54, %p55
      %p57 = scmp.ne.s32.totalorder %s49, %s51
      %p58 = scmp.eq.s32.totalorder %s20, 2
      %p59 = por %p57, %p58
      %p60 = scmp.ne.s32.totalorder %s51, %s52
      %p61 = scmp.eq.s32.totalorder %s20, 0
      %p62 = por %p60, %p61
      %p63 = scmp.ne.s32.totalorder %s51, %s52
      %p64 = scmp.eq.s32.totalorder %s21, 2
      %p65 = por %p63, %p64
      %p67 = scmp.ne.s32.totalorder %s52, %s66
      %p68 = scmp.eq.s32.totalorder %s21, 0
      %p69 = por %p67, %p68
      %s70 = ssub.s32 %s15, %s22
      %p71 = scmp.eq.s32.totalorder %s70, 0
      %s73 = sadd.s32 %s72, 1
      %s74 = scalar_select %p71, %s72, %s73
      %p77 = pneg %p71
      %p78 = scmp.eq.s32.totalorder %s15, 2
      %p79 = por %p77, %p78
      %p80 = scmp.ne.s32.totalorder %s72, %s75
      %p81 = scmp.eq.s32.totalorder %s15, 0
      %p82 = por %p80, %p81
      %p83 = scmp.ne.s32.totalorder %s72, %s75
      %p84 = scmp.eq.s32.totalorder %s20, 2
      %p85 = por %p83, %p84
      %p86 = scmp.ne.s32.totalorder %s75, %s76
      %p87 = scmp.eq.s32.totalorder %s20, 0
      %p88 = por %p86, %p87
      %p89 = scmp.ne.s32.totalorder %s75, %s76
      %p90 = scmp.eq.s32.totalorder %s21, 2
      %p91 = por %p89, %p90
      %p93 = scmp.ne.s32.totalorder %s76, %s92
      %p94 = scmp.eq.s32.totalorder %s21, 0
      %p95 = por %p93, %p94
      %p96 = scmp.le.s32.totalorder 1, %s15
      %p97 = scmp.lt.s32.totalorder %s15, 4
      %p98 = pnand %p96, %p97
      %p99 = pneg %p98
      // Predicated region
      $region9: #{tpu_custom_call.1} parent=5 // pred_check
        _
      $region10: #{tpu_custom_call.1} parent=5 // pred_check_branch
        %101 = sbr.rel (%p98) target = $region12
      $region11: #{tpu_custom_call.1} parent=5 // pred_region
        %s102 = ssub.s32 %s15, 1
        // Predicated region
        $region13: #{tpu_custom_call.1} parent=11 // pred_check
          %p103 = pneg %p62
        $region14: #{tpu_custom_call.1} parent=11 // pred_check_branch
          %105 = sbr.rel (%p103) target = $region16
        $region15: #{tpu_custom_call.1} parent=11 // pred_region
          %s107 = ssub.s32 2048, 2048
          %108 = vsyncadd [#allocation6], %s107
          %s109 = sshll.u32 [#allocation5], 4
          %s110 = int_to_ptr.vmem [resolvable:$true] %s109
          %115 = dma.hbm_to_vmem [thread:$0]  %s1, 2048, %s110, [#allocation6], 128, 128, 8
        $region16: #{tpu_custom_call.1} parent=11 // pred_fallthru
          _
      $region12: #{tpu_custom_call.1} parent=5 // pred_fallthru
        _
      %p116 = scmp.lt.s32.totalorder %s15, 3
      // Predicated region
      $region17: #{tpu_custom_call.1} parent=5 // pred_check
        %p117 = pneg %p116
      $region18: #{tpu_custom_call.1} parent=5 // pred_check_branch
        %119 = sbr.rel (%p117) target = $region20
      $region19: #{tpu_custom_call.1} parent=5 // pred_region
        // Predicated region
        $region21: #{tpu_custom_call.1} parent=19 // pred_check
          %p120 = pneg %p35
        $region22: #{tpu_custom_call.1} parent=19 // pred_check_branch
          %122 = sbr.rel (%p120) target = $region24
        $region23: #{tpu_custom_call.1} parent=19 // pred_region
          %s123 = sand.u32 %s25, 1
          %s124 = scalar_lea.sflag [#allocation3], %s123
          %s125 = sand.u32 %s25, 1
          %s126 = scalar_lea.vmem [#allocation2], %s125
          %s128 = ssub.s32 16, 16
          %129 = vsyncadd %s124, %s128
          %s130 = smul.addr %s15, 16
          %s131 = scalar_lea.hbm %s0, %s130
          %s133 = sshll.u32 %s126, 4
          %s134 = int_to_ptr.vmem [resolvable:$true] %s133
          %136 = dma.hbm_to_vmem [thread:$0]  %s131, 16, %s134, %s124
        $region24: #{tpu_custom_call.1} parent=19 // pred_fallthru
          _
      $region20: #{tpu_custom_call.1} parent=5 // pred_fallthru
        _
      %p137 = scmp.le.s32.totalorder 1, %s15
      %p138 = scmp.lt.s32.totalorder %s15, 4
      %p139 = pnand %p137, %p138
      %p140 = pneg %p139
      // Predicated region
      $region25: #{tpu_custom_call.1} parent=5 // pred_check
        _
      $region26: #{tpu_custom_call.1} parent=5 // pred_check_branch
        %142 = sbr.rel (%p139) target = $region28
      $region27: #{tpu_custom_call.1} parent=5 // pred_region
        %s143 = ssub.s32 %s15, 1
        %s144 = sand.u32 %s28, 1
        %s145 = scalar_lea.sflag [#allocation3], %s144
        %s146 = sand.u32 %s28, 1
        %s147 = scalar_lea.vmem [#allocation2], %s146
        // Predicated region
        $region29: #{tpu_custom_call.1} parent=27 // pred_check
          %p148 = pneg %p41
        $region30: #{tpu_custom_call.1} parent=27 // pred_check_branch
          %150 = sbr.rel (%p148) target = $region32
        $region31: #{tpu_custom_call.1} parent=27 // pred_region
          %151 = dma.done %s145, 16
        $region32: #{tpu_custom_call.1} parent=27 // pred_fallthru
          _
        // Predicated region
        $region33: #{tpu_custom_call.1} parent=27 // pred_check
          %p152 = pneg %p62
        $region34: #{tpu_custom_call.1} parent=27 // pred_check_branch
          %154 = sbr.rel (%p152) target = $region36
        $region35: #{tpu_custom_call.1} parent=27 // pred_region
          %155 = dma.done [#allocation6], 2048
        $region36: #{tpu_custom_call.1} parent=27 // pred_fallthru
          _
        %s156 = sand.u32 %s28, 1
        %s157 = scalar_lea.sflag [#allocation3], %s156
        %s158 = sand.u32 %s28, 1
        %s159 = scalar_lea.vmem [#allocation2], %s158
        %p160 = pneg %p41
        %p161 = pneg %p38
        %p162 = pneg %p62
        %p163 = pneg %p59
        %p164 = pneg %p88
        %p165 = pneg %p85
        %s166 = sand.u32 %s75, 1
        %s167 = scalar_lea.sflag [#allocation4], %s166
        %s168 = sand.u32 %s75, 1
        %s169 = smul.addr %s168, 128
        %s170 = scalar_lea.vmem [#allocation7], %s169
        %s171 = smul.u32 16, %s20
        %v172 = vld [vmem:[#allocation5] sm:$0xff]
        %v173 = vld [vmem:[#allocation5 + $0x8] sm:$0xff]
        %v174 = vld [vmem:[#allocation5 + $0x10] sm:$0xff]
        %v175 = vld [vmem:[#allocation5 + $0x18] sm:$0xff]
        %v176 = vld [vmem:[#allocation5 + $0x20] sm:$0xff]
        %v177 = vld [vmem:[#allocation5 + $0x28] sm:$0xff]
        %v178 = vld [vmem:[#allocation5 + $0x30] sm:$0xff]
        %v179 = vld [vmem:[#allocation5 + $0x38] sm:$0xff]
        %v180 = vld [vmem:[#allocation5 + $0x40] sm:$0xff]
        %v181 = vld [vmem:[#allocation5 + $0x48] sm:$0xff]
        %v182 = vld [vmem:[#allocation5 + $0x50] sm:$0xff]
        %v183 = vld [vmem:[#allocation5 + $0x58] sm:$0xff]
        %v184 = vld [vmem:[#allocation5 + $0x60] sm:$0xff]
        %v185 = vld [vmem:[#allocation5 + $0x68] sm:$0xff]
        %v186 = vld [vmem:[#allocation5 + $0x70] sm:$0xff]
        %v187 = vld [vmem:[#allocation5 + $0x78] sm:$0xff]
        %v188 = vld [vmem:[%s147] sm:$0x1]
        %v190 = vlaneseq
        %v191 = vshrl.u32 %v190, 7
        %v192 = vsub.s32 0, %v191
        %v193 = vrot.slane %v188, %v192
        %v195 = vmul.f32 %v172, %v193
        %v196 = vmul.f32 %v173, %v193
        %v197 = vmul.f32 %v174, %v193
        %v198 = vmul.f32 %v175, %v193
        %v199 = vmul.f32 %v176, %v193
        %v200 = vmul.f32 %v177, %v193
        %v201 = vmul.f32 %v178, %v193
        %v202 = vmul.f32 %v179, %v193
        %v203 = vmul.f32 %v180, %v193
        %v204 = vmul.f32 %v181, %v193
        %v205 = vmul.f32 %v182, %v193
        %v206 = vmul.f32 %v183, %v193
        %v207 = vmul.f32 %v184, %v193
        %v208 = vmul.f32 %v185, %v193
        %v209 = vmul.f32 %v186, %v193
        %v210 = vmul.f32 %v187, %v193
        %211 = vmatprep.subr.mxu0 0.0
        %212 = vmatpush1.xpose.msra.mxu0 %v187
        %213 = vmatprep.subr.mxu0 0.0
        %214 = vmatpush1.xpose.msra.mxu0 %v186
        %215 = vmatprep.subr.mxu0 0.0
        %216 = vmatpush1.xpose.msra.mxu0 %v185
        %217 = vmatprep.subr.mxu0 0.0
        %218 = vmatpush1.xpose.msra.mxu0 %v184
        %219 = vmatprep.subr.mxu0 0.0
        %220 = vmatpush1.xpose.msra.mxu0 %v183
        %221 = vmatprep.subr.mxu0 0.0
        %222 = vmatpush1.xpose.msra.mxu0 %v182
        %223 = vmatprep.subr.mxu0 0.0
        %224 = vmatpush1.xpose.msra.mxu0 %v181
        %225 = vmatprep.subr.mxu0 0.0
        %226 = vmatpush1.xpose.msra.mxu0 %v180
        %227 = vmatprep.subr.mxu0 0.0
        %228 = vmatpush1.xpose.msra.mxu0 %v179
        %229 = vmatprep.subr.mxu0 0.0
        %230 = vmatpush1.xpose.msra.mxu0 %v178
        %231 = vmatprep.subr.mxu0 0.0
        %232 = vmatpush1.xpose.msra.mxu0 %v177
        %233 = vmatprep.subr.mxu0 0.0
        %234 = vmatpush1.xpose.msra.mxu0 %v176
        %235 = vmatprep.subr.mxu0 0.0
        %236 = vmatpush1.xpose.msra.mxu0 %v175
        %237 = vmatprep.subr.mxu0 0.0
        %238 = vmatpush1.xpose.msra.mxu0 %v174
        %239 = vmatprep.subr.mxu0 0.0
        %240 = vmatpush1.xpose.msra.mxu0 %v173
        %241 = vmatprep.subr.mxu0 0.0
        %242 = vmatpush1.xpose.msra.mxu0 %v172
        %243 = vmatprep.subr.mxu0 0.0
        %244 = vmatpush2.xpose.msra.mxu0 0.0
        %245 = vmatprep.subr.mxu0 0.0
        %246 = vmatpush2.xpose.msra.mxu0 0.0
        %247 = vmatprep.subr.mxu0 0.0
        %248 = vmatpush2.xpose.msra.mxu0 0.0
        %249 = vmatprep.subr.mxu0 0.0
        %250 = vmatpush2.xpose.msra.mxu0 0.0
        %251 = vmatprep.subr.mxu0 0.0
        %252 = vmatpush2.xpose.msra.mxu0 0.0
        %253 = vmatprep.subr.mxu0 0.0
        %254 = vmatpush2.xpose.msra.mxu0 0.0
        %255 = vmatprep.subr.mxu0 0.0
        %256 = vmatpush2.xpose.msra.mxu0 0.0
        %257 = vmatprep.subr.mxu0 0.0
        %258 = vmatpush2.xpose.msra.mxu0 0.0
        %259 = vmatprep.subr.mxu0 0.0
        %260 = vmatpush2.xpose.msra.mxu0 0.0
        %261 = vmatprep.subr.mxu0 0.0
        %262 = vmatpush2.xpose.msra.mxu0 0.0
        %263 = vmatprep.subr.mxu0 0.0
        %264 = vmatpush2.xpose.msra.mxu0 0.0
        %265 = vmatprep.subr.mxu0 0.0
        %266 = vmatpush2.xpose.msra.mxu0 0.0
        %267 = vmatprep.subr.mxu0 0.0
        %268 = vmatpush2.xpose.msra.mxu0 0.0
        %269 = vmatprep.subr.mxu0 0.0
        %270 = vmatpush2.xpose.msra.mxu0 0.0
        %271 = vmatprep.subr.mxu0 0.0
        %272 = vmatpush2.xpose.msra.mxu0 0.0
        %273 = vmatprep.subr.mxu0 0.0
        %274 = vmatpush2.xpose.msra.mxu0 0.0
        %275 = vmatprep.mubr.f32.mxu0 0.0
        %276 = vmatmul.mubr.f32.gmra.mxu0 %v195
        %v277 = vpop.f32.mrf.mxu0
        %v278 = vadd.f32 0.0, %v277
        %v279 = vpop.f32.mrf.mxu0
        %280 = vmatprep.mubr.f32.mxu0 0.0
        %281 = vmatmul.mubr.f32.gmra.mxu0 %v196
        %v282 = vpop.f32.mrf.mxu0
        %v283 = vadd.f32 0.0, %v282
        %v284 = vpop.f32.mrf.mxu0
        %285 = vmatprep.mubr.f32.mxu0 0.0
        %286 = vmatmul.mubr.f32.gmra.mxu0 %v197
        %v287 = vpop.f32.mrf.mxu0
        %v288 = vadd.f32 0.0, %v287
        %v289 = vpop.f32.mrf.mxu0
        %290 = vmatprep.mubr.f32.mxu0 0.0
        %291 = vmatmul.mubr.f32.gmra.mxu0 %v198
        %v292 = vpop.f32.mrf.mxu0
        %v293 = vadd.f32 0.0, %v292
        %v294 = vpop.f32.mrf.mxu0
        %295 = vmatprep.mubr.f32.mxu0 0.0
        %296 = vmatmul.mubr.f32.gmra.mxu0 %v199
        %v297 = vpop.f32.mrf.mxu0
        %v298 = vadd.f32 0.0, %v297
        %v299 = vpop.f32.mrf.mxu0
        %300 = vmatprep.mubr.f32.mxu0 0.0
        %301 = vmatmul.mubr.f32.gmra.mxu0 %v200
        %v302 = vpop.f32.mrf.mxu0
        %v303 = vadd.f32 0.0, %v302
        %v304 = vpop.f32.mrf.mxu0
        %305 = vmatprep.mubr.f32.mxu0 0.0
        %306 = vmatmul.mubr.f32.gmra.mxu0 %v201
        %v307 = vpop.f32.mrf.mxu0
        %v308 = vadd.f32 0.0, %v307
        %v309 = vpop.f32.mrf.mxu0
        %310 = vmatprep.mubr.f32.mxu0 0.0
        %311 = vmatmul.mubr.f32.gmra.mxu0 %v202
        %v312 = vpop.f32.mrf.mxu0
        %v313 = vadd.f32 0.0, %v312
        %v314 = vpop.f32.mrf.mxu0
        %315 = vmatprep.mubr.f32.mxu0 0.0
        %316 = vmatmul.mubr.f32.gmra.mxu0 %v203
        %v317 = vpop.f32.mrf.mxu0
        %v318 = vadd.f32 0.0, %v317
        %v319 = vpop.f32.mrf.mxu0
        %320 = vmatprep.mubr.f32.mxu0 0.0
        %321 = vmatmul.mubr.f32.gmra.mxu0 %v204
        %v322 = vpop.f32.mrf.mxu0
        %v323 = vadd.f32 0.0, %v322
        %v324 = vpop.f32.mrf.mxu0
        %325 = vmatprep.mubr.f32.mxu0 0.0
        %326 = vmatmul.mubr.f32.gmra.mxu0 %v205
        %v327 = vpop.f32.mrf.mxu0
        %v328 = vadd.f32 0.0, %v327
        %v329 = vpop.f32.mrf.mxu0
        %330 = vmatprep.mubr.f32.mxu0 0.0
        %331 = vmatmul.mubr.f32.gmra.mxu0 %v206
        %v332 = vpop.f32.mrf.mxu0
        %v333 = vadd.f32 0.0, %v332
        %v334 = vpop.f32.mrf.mxu0
        %335 = vmatprep.mubr.f32.mxu0 0.0
        %336 = vmatmul.mubr.f32.gmra.mxu0 %v207
        %v337 = vpop.f32.mrf.mxu0
        %v338 = vadd.f32 0.0, %v337
        %v339 = vpop.f32.mrf.mxu0
        %340 = vmatprep.mubr.f32.mxu0 0.0
        %341 = vmatmul.mubr.f32.gmra.mxu0 %v208
        %v342 = vpop.f32.mrf.mxu0
        %v343 = vadd.f32 0.0, %v342
        %v344 = vpop.f32.mrf.mxu0
        %345 = vmatprep.mubr.f32.mxu0 0.0
        %346 = vmatmul.mubr.f32.gmra.mxu0 %v209
        %v347 = vpop.f32.mrf.mxu0
        %v348 = vadd.f32 0.0, %v347
        %v349 = vpop.f32.mrf.mxu0
        %350 = vmatprep.mubr.f32.mxu0 0.0
        %351 = vmatmul.mubr.f32.gmra.mxu0 %v210
        %v352 = vpop.f32.mrf.mxu0
        %v353 = vadd.f32 0.0, %v352
        %v354 = vpop.f32.mrf.mxu0
        %355 = vdwg.mxu0
        %356 = vst [vmem:[%s170] sm:$0xff] %v278
        %357 = vst [vmem:[%s170 + $0x8] sm:$0xff] %v283
        %358 = vst [vmem:[%s170 + $0x10] sm:$0xff] %v288
        %359 = vst [vmem:[%s170 + $0x18] sm:$0xff] %v293
        %360 = vst [vmem:[%s170 + $0x20] sm:$0xff] %v298
        %361 = vst [vmem:[%s170 + $0x28] sm:$0xff] %v303
        %362 = vst [vmem:[%s170 + $0x30] sm:$0xff] %v308
        %363 = vst [vmem:[%s170 + $0x38] sm:$0xff] %v313
        %364 = vst [vmem:[%s170 + $0x40] sm:$0xff] %v318
        %365 = vst [vmem:[%s170 + $0x48] sm:$0xff] %v323
        %366 = vst [vmem:[%s170 + $0x50] sm:$0xff] %v328
        %367 = vst [vmem:[%s170 + $0x58] sm:$0xff] %v333
        %368 = vst [vmem:[%s170 + $0x60] sm:$0xff] %v338
        %369 = vst [vmem:[%s170 + $0x68] sm:$0xff] %v343
        %370 = vst [vmem:[%s170 + $0x70] sm:$0xff] %v348
        %371 = vst [vmem:[%s170 + $0x78] sm:$0xff] %v353
        %s372 = sand.u32 %s75, 1
        %s373 = scalar_lea.sflag [#allocation4], %s372
        %s374 = sand.u32 %s75, 1
        %s375 = smul.addr %s374, 128
        %s376 = scalar_lea.vmem [#allocation7], %s375
        // Predicated region
        $region37: #{tpu_custom_call.1} parent=27 // pred_check
          %p377 = pneg %p85
        $region38: #{tpu_custom_call.1} parent=27 // pred_check_branch
          %379 = sbr.rel (%p377) target = $region40
        $region39: #{tpu_custom_call.1} parent=27 // pred_region
          %s380 = smul.u32 16, %s20
          %s382 = ssub.s32 2048, 2048
          %383 = vsyncadd %s373, %s382
          %s384 = smul.addr %s380, 128
          %s385 = scalar_lea.hbm %s2, %s384
          %s386 = sshll.u32 %s376, 4
          %s387 = int_to_ptr.vmem [resolvable:$true] %s386
          %392 = dma.vmem_to_hbm [thread:$0]  %s387, 2048, %s385, %s373, 128, 128, 8
        $region40: #{tpu_custom_call.1} parent=27 // pred_fallthru
          _
      $region28: #{tpu_custom_call.1} parent=5 // pred_fallthru
        _
      %p393 = scmp.le.s32.totalorder 2, %s15
      // Predicated region
      $region41: #{tpu_custom_call.1} parent=5 // pred_check
        %p394 = pneg %p393
      $region42: #{tpu_custom_call.1} parent=5 // pred_check_branch
        %396 = sbr.rel (%p394) target = $region44
      $region43: #{tpu_custom_call.1} parent=5 // pred_region
        %s397 = ssub.s32 %s15, 2
        // Predicated region
        $region45: #{tpu_custom_call.1} parent=43 // pred_check
          %p398 = pneg %p91
        $region46: #{tpu_custom_call.1} parent=43 // pred_check_branch
          %400 = sbr.rel (%p398) target = $region48
        $region47: #{tpu_custom_call.1} parent=43 // pred_region
          %s401 = sand.u32 %s76, 1
          %s402 = scalar_lea.sflag [#allocation4], %s401
          %s403 = sand.u32 %s76, 1
          %s404 = smul.addr %s403, 128
          %s405 = scalar_lea.vmem [#allocation7], %s404
          %406 = dma.done %s402, 2048
        $region48: #{tpu_custom_call.1} parent=43 // pred_fallthru
          _
      $region44: #{tpu_custom_call.1} parent=5 // pred_fallthru
        _
    $region6: #{tpu_custom_call.1} parent=1 // loop_footer
      %s19 = sadd.s32 1, %s15
    $region7: #{tpu_custom_call.1} parent=1 // loop_footer_branch
      %14 = sbr.rel target = $region3
    $region8: #{tpu_custom_call.1} parent=1 // loop_exit
      _
    %407 = vsyncpa [#allocation3], 1
    %s408 = scalar_lea.sflag [#allocation3], 1
    %409 = vsyncpa %s408, 1
    %410 = vsyncpa [#allocation6], 1
    %411 = vsyncpa [#allocation4], 1
    %s412 = scalar_lea.sflag [#allocation4], 1
    %413 = vsyncpa %s412, 1

</llo_original>
